<compile_context>
chip_gen: v5e
topology: v5e:2x2
jax: 0.10.0
libtpu: 0.0.40
codegen_flags: <defaults>
</compile_context>

<pallas_src>
import jax
import jax.numpy as jnp
from jax.experimental import pallas as pl
from jax.experimental.pallas import tpu as pltpu


_F = 2916       # in_features of nn.Linear(2916, 1)
_TB_MAX = 1024  # max rows per batch tile: (1024, 2944) f32 ~ 11.5 MiB / buffer


def _round_up(x, m):
    return ((x + m - 1) // m) * m


def _regressor_kernel(x_ref, w_ref, b_ref, o_ref):
    # x_ref: (TB, F) VMEM (f32 or bf16); w_ref: (1, F) VMEM lane-dense f32;
    # b_ref: (1, 1) SMEM; o_ref: (TB, 1) VMEM f32.
    x = x_ref[...].astype(jnp.float32)            # free cast if producer gives bf16
    w = w_ref[...]                                # (1, F) broadcasts over rows
    acc = jnp.sum(x * w, axis=-1, keepdims=True)  # VPU mul + XLU reduce -> (TB, 1)
    o_ref[...] = (acc + b_ref[0, 0]).astype(o_ref.dtype)


def _choose_batch_tile(B):
    """Pick a sublane-aligned, load-balanced batch tile size."""
    # Steps needed so each x tile stays under the TB_MAX budget.
    steps = pl.cdiv(B, _TB_MAX)
    # Once the batch is big enough that per-step overhead (~0.35us) is noise
    # vs the per-step DMA on every generation, force >=2 (and for big batches
    # >=4) grid steps so v7x's two TensorCores both issue DMAs and each still
    # pipelines its own steps.
    if B >= 256:
        steps = max(steps, 2)
    if B >= 2 * _TB_MAX:
        steps = max(steps, 4)
    steps = max(1, min(steps, B // 8 if B >= 8 else 1))  # tiles >= 8 rows
    # Balance ragged batches (avoid a nearly-empty trailing tile) and keep the
    # sublane (8-row) alignment required by the (8,128) block constraint.
    return _round_up(pl.cdiv(B, steps), 8)


def regressor_forward(x, weight, bias):
    """Forward pass of Regressor: x @ weight.T + bias.

    x:      (B, F) float32 (or bfloat16 from a fused producer)
    weight: (1, F) float32  (PyTorch nn.Linear layout: (out, in))
    bias:   (1,)   float32
    returns (B, 1) float32
    """
    B, F = x.shape
    assert weight.shape == (1, F)
    assert bias.shape == (1,)

    w = weight.astype(jnp.float32)
    b2d = bias.reshape(1, 1).astype(jnp.float32)

    TB = _choose_batch_tile(B)
    grid = (pl.cdiv(B, TB),)

    # Explicit VMEM budget: 2 double-buffered x tiles + weight + output tiles
    # + slack.  With TB_MAX=1024 this tops out around ~28 MiB, under v7x's
    # 64 MiB physical VMEM and far under v5e/v6e's 128 MiB.
    f_pad = _round_up(F, 128)
    x_tile_bytes = TB * f_pad * x.dtype.itemsize
    vmem_limit = (2 * x_tile_bytes          # double-buffered x
                  + 2 * f_pad * 4           # weight (both buffers)
                  + 2 * TB * 128 * 4        # padded (TB, 1) output tiles
                  + (2 << 20))              # slack for compiler scratch
    vmem_limit = int(max(vmem_limit, 8 << 20))
    vmem_limit = int(min(vmem_limit, 48 << 20))

    # Memory-bound hint for XLA's scheduler around this custom call.
    cost = pl.CostEstimate(
        flops=2 * B * F,
        transcendentals=0,
        bytes_accessed=int(x.dtype.itemsize) * B * F + 4 * (F + 1 + B),
    )

    return pl.pallas_call(
        _regressor_kernel,
        out_shape=jax.ShapeDtypeStruct((B, 1), jnp.float32),
        grid_spec=pl.GridSpec(
            grid=grid,
            in_specs=[
                # x: tiled over the batch; F is the full feature extent.
                # (pipeline_mode=pl.Buffered(3) only if an xprof trace shows
                #  exposed DMA gaps on v7x — not enabled by default.)
                pl.BlockSpec((TB, F), lambda i: (i, 0)),
                # weight: lane-dense (1, F), same block every grid step.
                pl.BlockSpec((1, F), lambda i: (0, 0)),
                # bias: scalar in SMEM — no VMEM tile, no per-step DMA.
                pl.BlockSpec(memory_space=pltpu.MemorySpace.SMEM),
            ],
            out_specs=pl.BlockSpec((TB, 1), lambda i: (i, 0)),
        ),
        compiler_params=pltpu.CompilerParams(
            # Batch tiles are independent -> shard across TCs on v7x megacore.
            dimension_semantics=("parallel",),
            vmem_limit_bytes=vmem_limit,
        ),
        cost_estimate=cost,
    )(x, w, b2d)


if __name__ == "__main__":
    key = jax.random.PRNGKey(0)
    k_x, k_w, k_b = jax.random.split(key, 3)

    B, F = 8, _F  # Linear(2916, 1): in_features fixed by the module

    # Deterministic synthetic parameters (PyTorch-style uniform init bound).
    bound = 1.0 / jnp.sqrt(jnp.float32(F))
    weight = jax.random.uniform(k_w, (1, F), jnp.float32, -bound, bound)
    bias = jax.random.uniform(k_b, (1,), jnp.float32, -bound, bound)

    x = jax.random.normal(k_x, (B, F), jnp.float32)

    out = jax.block_until_ready(regressor_forward(x, weight, bias))
    ref = x @ weight.T + bias
    assert out.shape == (B, 1)
    assert jnp.allclose(out, ref, atol=1e-4, rtol=1e-4), (
        f"max abs err {jnp.max(jnp.abs(out - ref))}"
    )

    # Ragged batch (B not a multiple of 8) exercises the masked/padded tile.
    B2 = 20
    x2 = jax.random.normal(jax.random.PRNGKey(1), (B2, F), jnp.float32)
    out2 = jax.block_until_ready(regressor_forward(x2, weight, bias))
    ref2 = x2 @ weight.T + bias
    assert out2.shape == (B2, 1)
    assert jnp.allclose(out2, ref2, atol=1e-4, rtol=1e-4), (
        f"max abs err {jnp.max(jnp.abs(out2 - ref2))}"
    )

    print("KERNEL_OK")
</pallas_src>

<mosaic_0001>
module attributes {stable_mosaic.version = 11 : i64} {
  func.func @_regressor_kernel(%arg0: i32, %arg1: memref<8x2916xf32, #tpu.memory_space<vmem>>, %arg2: memref<1x2916xf32, #tpu.memory_space<vmem>>, %arg3: memref<1x1xf32, #tpu.memory_space<smem>>, %arg4: memref<8x1xf32, #tpu.memory_space<vmem>>) attributes {dimension_semantics = [#tpu.dimension_semantics<parallel>], iteration_bounds = array<i64: 1>, scalar_prefetch = 0 : i64, scratch_operands = 0 : i64, tpu.core_type = #tpu.core_type<tc>, window_params = [{transform_indices = @transform_0, window_bounds = array<i64: 8, 2916>}, {pipeline_mode = #tpu.pipeline_mode<synchronous>, transform_indices = @transform_1, window_bounds = array<i64: 1, 2916>}, {transform_indices = @transform_2, window_bounds = array<i64: 1, 1>}, {transform_indices = @transform_3, window_bounds = array<i64: 8, 1>}]} {
    %c0 = arith.constant 0 : index
    %c0_0 = arith.constant 0 : index
    %0 = vector.load %arg1[%c0, %c0_0] : memref<8x2916xf32, #tpu.memory_space<vmem>>, vector<8x2916xf32>
    %c0_1 = arith.constant 0 : index
    %c0_2 = arith.constant 0 : index
    %1 = vector.load %arg2[%c0_1, %c0_2] : memref<1x2916xf32, #tpu.memory_space<vmem>>, vector<1x2916xf32>
    %2 = vector.broadcast %1 : vector<1x2916xf32> to vector<8x2916xf32>
    %3 = arith.mulf %0, %2 : vector<8x2916xf32>
    %cst = arith.constant dense<0.000000e+00> : vector<8xf32>
    %4 = vector.multi_reduction <add>, %3, %cst [1] : vector<8x2916xf32> to vector<8xf32>
    %5 = vector.shape_cast %4 : vector<8xf32> to vector<8x1xf32>
    %c0_3 = arith.constant 0 : index
    %c0_4 = arith.constant 0 : index
    %6 = memref.load %arg3[%c0_3, %c0_4] : memref<1x1xf32, #tpu.memory_space<smem>>
    %7 = vector.broadcast %6 : f32 to vector<8x1xf32>
    %8 = arith.addf %5, %7 : vector<8x1xf32>
    %c0_5 = arith.constant 0 : index
    %c0_6 = arith.constant 0 : index
    %9 = vector.load %arg4[%c0_5, %c0_6] : memref<8x1xf32, #tpu.memory_space<vmem>>, vector<8x1xf32>
    tpu.vector_store %arg4[%c0_5, %c0_6], %8 {strides = array<i32>} : memref<8x1xf32, #tpu.memory_space<vmem>>, vector<8x1xf32>,
    return
  }
  func.func @transform_0(%arg0: i32) -> (i32, i32) {
    %c0_i32 = arith.constant 0 : i32
    %c0_i32_0 = arith.constant 0 : i32
    return %arg0, %c0_i32 : i32, i32
  }
  func.func @transform_1(%arg0: i32) -> (i32, i32) {
    %c0_i32 = arith.constant 0 : i32
    %c0_i32_0 = arith.constant 0 : i32
    %c0_i32_1 = arith.constant 0 : i32
    return %c0_i32, %c0_i32_0 : i32, i32
  }
  func.func @transform_2(%arg0: i32) -> (i32, i32) {
    %c0_i32 = arith.constant 0 : i32
    %c0_i32_0 = arith.constant 0 : i32
    %c0_i32_1 = arith.constant 0 : i32
    return %c0_i32, %c0_i32_0 : i32, i32
  }
  func.func @transform_3(%arg0: i32) -> (i32, i32) {
    %c0_i32 = arith.constant 0 : i32
    %c0_i32_0 = arith.constant 0 : i32
    return %arg0, %c0_i32 : i32, i32
  }
}

</mosaic_0001>

<llo_original>
// kernel: tpu_custom_call.1
$region0: #{tpu_custom_call.1}
  #allocation0 [shape = 'u32[]', space=smem, size = 0x4, offset = 0x4, fixed_abs, tag = 'smem constant byte address 0x4 - core index']
  #allocation1 [shape = 'u32[72,128]{1,0:T(1,128)}', space=vmem, size = 0x9000, scoped, tag = 'internal scratch']
  #allocation2 [shape = 'f32[1,1]{1,0:T(1,128)S(6)}', space=smem, size = 0x200, scoped, tag = 'scoped memory for tpu_custom_call.1']
  %s0 = inlined_call_operand.hbm [shape: f32[8,2916], index: 0, kind: input, shape index: {}]
  %s1 = inlined_call_operand.hbm [shape: f32[1,2916], index: 1, kind: input, shape index: {}]
  %s2 = inlined_call_operand.<no memory space> [shape: f32[1,1], index: 2, kind: input, shape index: {}]
  %s3 = inlined_call_operand.vmem [shape: f32[8,1], index: 3, kind: output, shape index: {}]
  %s4 = sld [smem:[#allocation0]]
  $region30: #{tpu_custom_call.1} parent=0
    _
  %s6 = ssub.s32 1, %s4
  %s7 = scalar_select 0, %s6, %s4
  %8 = sst [smem:[#allocation2]] %s2
  $region1: #{tpu_custom_call.1} parent=0
    #allocation3 [shape = 'u8[94208]{0}', space=vmem, size = 0x17000, scoped, tag = 'input window, operand 0, single buffered']
    #allocation4 [shape = 's32[1]{0}', space=sflag, size = 0x4, scoped, tag = 'scoped memory for tpu_custom_call.1']
    #allocation5 [shape = 'u8[11776]{0}', space=vmem, size = 0x3000, scoped, tag = 'input window, operand 1, single buffered']
    #allocation6 [shape = 's32[1]{0}', space=sflag, size = 0x4, scoped, tag = 'scoped memory for tpu_custom_call.1']
    %9 = vsyncpa [#allocation4], 0
    %10 = vsyncpa [#allocation6], 0
    // Predicated region
    $region2: #{tpu_custom_call.1} parent=1 // pred_check
      _
    $region3: #{tpu_custom_call.1} parent=1 // pred_check_branch
      %12 = sbr.rel (0) target = $region5
    $region4: #{tpu_custom_call.1} parent=1 // pred_region
      %14 = vsyncadd [#allocation4], 0
      %s16 = sshll.u32 %s0, 4
      %s17 = int_to_ptr.hbm [resolvable:$true] %s16
      %s18 = sshll.u32 [#allocation3], 4
      %s19 = int_to_ptr.vmem [resolvable:$true] %s18
      %21 = dma.hbm_to_vmem [thread:$0]  %s17, 2944, %s19, [#allocation4]
    $region5: #{tpu_custom_call.1} parent=1 // pred_fallthru
      _
    // Predicated region
    $region6: #{tpu_custom_call.1} parent=1 // pred_check
      _
    $region7: #{tpu_custom_call.1} parent=1 // pred_check_branch
      %23 = sbr.rel (0) target = $region9
    $region8: #{tpu_custom_call.1} parent=1 // pred_region
      %25 = vsyncadd [#allocation6], 0
      %s27 = sshll.u32 %s1, 4
      %s28 = int_to_ptr.hbm [resolvable:$true] %s27
      %s29 = sshll.u32 [#allocation5], 4
      %s30 = int_to_ptr.vmem [resolvable:$true] %s29
      %32 = dma.hbm_to_vmem [thread:$0]  %s28, 368, %s30, [#allocation6]
    $region9: #{tpu_custom_call.1} parent=1 // pred_fallthru
      _
    // Predicated region
    $region10: #{tpu_custom_call.1} parent=1 // pred_check
      _
    $region11: #{tpu_custom_call.1} parent=1 // pred_check_branch
      %34 = sbr.rel (0) target = $region13
    $region12: #{tpu_custom_call.1} parent=1 // pred_region
      _
    $region13: #{tpu_custom_call.1} parent=1 // pred_fallthru
      _
    // Predicated region
    $region14: #{tpu_custom_call.1} parent=1 // pred_check
      _
    $region15: #{tpu_custom_call.1} parent=1 // pred_check_branch
      %36 = sbr.rel (0) target = $region17
    $region16: #{tpu_custom_call.1} parent=1 // pred_region
      %38 = dma.done [#allocation4], 2944
    $region17: #{tpu_custom_call.1} parent=1 // pred_fallthru
      _
    // Predicated region
    $region18: #{tpu_custom_call.1} parent=1 // pred_check
      _
    $region19: #{tpu_custom_call.1} parent=1 // pred_check_branch
      %40 = sbr.rel (0) target = $region21
    $region20: #{tpu_custom_call.1} parent=1 // pred_region
      %42 = dma.done [#allocation6], 368
    $region21: #{tpu_custom_call.1} parent=1 // pred_fallthru
      _
    %v43 = vld [vmem:[#allocation3] sm:$0xff]
    %v44 = vld [vmem:[#allocation3 + $0x8] sm:$0xff]
    %v45 = vld [vmem:[#allocation3 + $0x10] sm:$0xff]
    %v46 = vld [vmem:[#allocation3 + $0x18] sm:$0xff]
    %v47 = vld [vmem:[#allocation3 + $0x20] sm:$0xff]
    %v48 = vld [vmem:[#allocation3 + $0x28] sm:$0xff]
    %v49 = vld [vmem:[#allocation3 + $0x30] sm:$0xff]
    %v50 = vld [vmem:[#allocation3 + $0x38] sm:$0xff]
    %v51 = vld [vmem:[#allocation3 + $0x40] sm:$0xff]
    %v52 = vld [vmem:[#allocation3 + $0x48] sm:$0xff]
    %v53 = vld [vmem:[#allocation3 + $0x50] sm:$0xff]
    %v54 = vld [vmem:[#allocation3 + $0x58] sm:$0xff]
    %v55 = vld [vmem:[#allocation3 + $0x60] sm:$0xff]
    %v56 = vld [vmem:[#allocation3 + $0x68] sm:$0xff]
    %v57 = vld [vmem:[#allocation3 + $0x70] sm:$0xff]
    %v58 = vld [vmem:[#allocation3 + $0x78] sm:$0xff]
    %v59 = vld [vmem:[#allocation3 + $0x80] sm:$0xff]
    %v60 = vld [vmem:[#allocation3 + $0x88] sm:$0xff]
    %v61 = vld [vmem:[#allocation3 + $0x90] sm:$0xff]
    %v62 = vld [vmem:[#allocation3 + $0x98] sm:$0xff]
    %v63 = vld [vmem:[#allocation3 + $0xa0] sm:$0xff]
    %v64 = vld [vmem:[#allocation3 + $0xa8] sm:$0xff]
    %v65 = vld [vmem:[#allocation3 + $0xb0] sm:$0xff]
    %v66 = vld [vmem:[#allocation5] sm:$0xff]
    %v67 = vld [vmem:[#allocation5 + $0x8] sm:$0xff]
    %v68 = vld [vmem:[#allocation5 + $0x10] sm:$0x7f]
    %v72 = vperm.slane %v66, 0
    %v73 = vperm.slane %v66, 1
    %v74 = vperm.slane %v66, 2
    %v75 = vperm.slane %v66, 3
    %v76 = vperm.slane %v66, 4
    %v77 = vperm.slane %v66, 5
    %v78 = vperm.slane %v66, 6
    %v79 = vperm.slane %v66, 7
    %v80 = vperm.slane %v67, 0
    %v81 = vperm.slane %v67, 1
    %v82 = vperm.slane %v67, 2
    %v83 = vperm.slane %v67, 3
    %v84 = vperm.slane %v67, 4
    %v85 = vperm.slane %v67, 5
    %v86 = vperm.slane %v67, 6
    %v87 = vperm.slane %v67, 7
    %v88 = vperm.slane %v68, 0
    %v89 = vperm.slane %v68, 1
    %v90 = vperm.slane %v68, 2
    %v91 = vperm.slane %v68, 3
    %v92 = vperm.slane %v68, 4
    %v93 = vperm.slane %v68, 5
    %v94 = vperm.slane %v68, 6
    %v118 = vmul.f32 %v43, %v72
    %v119 = vmul.f32 %v44, %v73
    %v120 = vmul.f32 %v45, %v74
    %v121 = vmul.f32 %v46, %v75
    %v122 = vmul.f32 %v47, %v76
    %v123 = vmul.f32 %v48, %v77
    %v124 = vmul.f32 %v49, %v78
    %v125 = vmul.f32 %v50, %v79
    %v126 = vmul.f32 %v51, %v80
    %v127 = vmul.f32 %v52, %v81
    %v128 = vmul.f32 %v53, %v82
    %v129 = vmul.f32 %v54, %v83
    %v130 = vmul.f32 %v55, %v84
    %v131 = vmul.f32 %v56, %v85
    %v132 = vmul.f32 %v57, %v86
    %v133 = vmul.f32 %v58, %v87
    %v134 = vmul.f32 %v59, %v88
    %v135 = vmul.f32 %v60, %v89
    %v136 = vmul.f32 %v61, %v90
    %v137 = vmul.f32 %v62, %v91
    %v138 = vmul.f32 %v63, %v92
    %v139 = vmul.f32 %v64, %v93
    %v140 = vmul.f32 %v65, %v94
    %v141 = vadd.f32 %v118, %v119
    %v142 = vadd.f32 %v141, %v120
    %v143 = vadd.f32 %v142, %v121
    %v144 = vadd.f32 %v143, %v122
    %v145 = vadd.f32 %v144, %v123
    %v146 = vadd.f32 %v145, %v124
    %v147 = vadd.f32 %v146, %v125
    %v148 = vadd.f32 %v147, %v126
    %v149 = vadd.f32 %v148, %v127
    %v150 = vadd.f32 %v149, %v128
    %v151 = vadd.f32 %v150, %v129
    %v152 = vadd.f32 %v151, %v130
    %v153 = vadd.f32 %v152, %v131
    %v154 = vadd.f32 %v153, %v132
    %v155 = vadd.f32 %v154, %v133
    %v156 = vadd.f32 %v155, %v134
    %v157 = vadd.f32 %v156, %v135
    %v158 = vadd.f32 %v157, %v136
    %v159 = vadd.f32 %v158, %v137
    %v160 = vadd.f32 %v159, %v138
    %v161 = vadd.f32 %v160, %v139
    %vm162 = vcmask 818176
    %v163 = vsel %vm162, %v140, 0.0
    %v164 = vadd.f32 %v161, %v163
    %165 = vadd.xlane.f32.xlu0 %v164
    %v166 = vpop.xlane.xlu0 %165
    %s167 = sld [smem:[#allocation2]]
    %v168 = vstv %s167
    %v169 = vadd.f32 %v166, %v168
    %vm170 = vcmask 7168
    %171 = vst.msk [vmem:[%s3] sm:$0xff] %vm170, %v169
    // Predicated region
    $region22: #{tpu_custom_call.1} parent=1 // pred_check
      _
    $region23: #{tpu_custom_call.1} parent=1 // pred_check_branch
      %173 = sbr.rel (0) target = $region25
    $region24: #{tpu_custom_call.1} parent=1 // pred_region
      _
    $region25: #{tpu_custom_call.1} parent=1 // pred_fallthru
      _
    // Predicated region
    $region26: #{tpu_custom_call.1} parent=1 // pred_check
      _
    $region27: #{tpu_custom_call.1} parent=1 // pred_check_branch
      %175 = sbr.rel (0) target = $region29
    $region28: #{tpu_custom_call.1} parent=1 // pred_region
      _
    $region29: #{tpu_custom_call.1} parent=1 // pred_fallthru
      _
    %176 = vsyncpa [#allocation4], 1
    %177 = vsyncpa [#allocation6], 1

</llo_original>
